<compile_context>
chip_gen: v7x
topology: tpu7x:2x2x1
jax: 0.10.0
libtpu: 0.0.40
codegen_flags: <defaults>
</compile_context>

<pallas_src>
import functools

import jax
import jax.numpy as jnp
from jax import lax
from jax.experimental import pallas as pl
from jax.experimental.pallas import tpu as pltpu


def _round_up(x, m):
    return ((x + m - 1) // m) * m


def _generator_kernel(x_ref,
                      w0_ref, b0_ref,
                      w1_ref, b1_ref,
                      w2_ref, b2_ref,
                      w3_ref, b3_ref,
                      o_ref,
                      *, n_inputs, compute_dtype, precision):
    # ---- dense_0 + ReLU on the VPU (K=4 is too small for the MXU) --------
    x = x_ref[...]                         # (tb, n_inputs)   f32
    w0 = w0_ref[...]                       # (n_inputs, n_neurons) f32
    h = x[:, 0:1] * w0[0:1, :]
    for k in range(1, n_inputs):           # static unroll over the 4 inputs
        h = h + x[:, k:k + 1] * w0[k:k + 1, :]
    h = jnp.maximum(h + b0_ref[...], 0.0)  # f32

    # ---- dense_1 + ReLU on the MXU (weights pre-cast to compute_dtype) ---
    h = jnp.dot(h.astype(compute_dtype), w1_ref[...],
                preferred_element_type=jnp.float32, precision=precision)
    h = jnp.maximum(h + b1_ref[...], 0.0)

    # ---- dense_2 + ReLU ---------------------------------------------------
    h = jnp.dot(h.astype(compute_dtype), w2_ref[...],
                preferred_element_type=jnp.float32, precision=precision)
    h = jnp.maximum(h + b2_ref[...], 0.0)

    # ---- dense_3 (linear output) -------------------------------------------
    out = jnp.dot(h.astype(compute_dtype), w3_ref[...],
                  preferred_element_type=jnp.float32,
                  precision=precision) + b3_ref[...]
    o_ref[...] = out.astype(o_ref.dtype)


def generator_forward(noise, params, *, block_batch=4096,
                      compute_dtype=jnp.bfloat16, precision=None):
    """Forward pass of the Generator.

    noise:  (B, n_inputs) float32.
    params: dict with w{i} of shape (in, out) and b{i} of shape (1, out), f32.
    block_batch:   upper bound on the batch tile per grid step.
    compute_dtype: MXU input dtype for dense_1..3 (bf16 default, f32 for
                   higher precision).  Accumulation is always f32.
    precision:     lax.Precision for the MXU dots (None = default; HIGHEST for
                   bit-faithful f32 at ~3x MXU cost).
    """
    B, n_inputs = noise.shape
    n_neurons = params["w1"].shape[0]
    data_dim = params["w3"].shape[1]

    # --- batch tile: as large as useful, multiple of 8 (f32 sublane) --------
    tb = min(_round_up(block_batch, 8), _round_up(B, 8))
    # Megacore/padding-aware cap: aim for >= 4 grid steps when the batch
    # allows so v7x's two TensorCores both get work and round_up(B, tb)
    # padding stays small relative to B.
    quarter = _round_up(max((B + 3) // 4, 8), 8)
    tb = max(min(tb, quarter), 8)

    if B % tb != 0:
        b_pad = _round_up(B, tb)
        noise = jnp.pad(noise, ((0, b_pad - B), (0, 0)))
    else:
        b_pad = B
    grid = (b_pad // tb,)

    # --- cast weights once in the wrapper (no per-step casts in-kernel) -----
    w0 = params["w0"].astype(jnp.float32)     # dense_0 runs on the VPU in f32
    b0 = params["b0"].astype(jnp.float32)
    w1 = params["w1"].astype(compute_dtype)
    b1 = params["b1"].astype(jnp.float32)
    w2 = params["w2"].astype(compute_dtype)
    b2 = params["b2"].astype(jnp.float32)
    w3 = params["w3"].astype(compute_dtype)
    b3 = params["b3"].astype(jnp.float32)
    weight_bias_ops = (w0, b0, w1, b1, w2, b2, w3, b3)

    def _resident_spec(op):
        # Bind rank at definition time (no late-binding closure bug).
        ndim = op.ndim
        return pl.BlockSpec(op.shape, lambda i, _n=ndim: (0,) * _n)

    in_specs = [pl.BlockSpec((tb, n_inputs), lambda i: (i, 0))]        # streamed
    in_specs += [_resident_spec(op) for op in weight_bias_ops]         # resident
    out_spec = pl.BlockSpec((tb, data_dim), lambda i: (i, 0))

    # --- scoped VMEM budget from lane-padded block math ---------------------
    # Input (tb,4) and output (tb,32) blocks are stored lane-padded to 128
    # (512 B/row in f32), each double-buffered; plus ~4 live lane-padded
    # activation copies and a couple MiB of headroom for weights/scratch.
    lane_row_bytes = 128 * 4
    vmem_est = (2 + 2 + 4) * tb * lane_row_bytes + (2 << 20)
    vmem_limit = int(min(48 << 20, max(vmem_est, 16 << 20)))

    # --- advisory cost estimate ---------------------------------------------
    flops_per_sample = 2 * (n_inputs * n_neurons
                            + n_neurons * n_neurons
                            + n_neurons * n_neurons
                            + n_neurons * data_dim)
    param_bytes = sum(int(p.size) * p.dtype.itemsize for p in weight_bias_ops)
    cost = pl.CostEstimate(
        flops=b_pad * flops_per_sample,
        transcendentals=0,
        bytes_accessed=b_pad * (n_inputs + data_dim) * 4 + param_bytes,
    )

    kernel = functools.partial(_generator_kernel,
                               n_inputs=n_inputs,
                               compute_dtype=compute_dtype,
                               precision=precision)

    out = pl.pallas_call(
        kernel,
        out_shape=jax.ShapeDtypeStruct((b_pad, data_dim), jnp.float32),
        grid=grid,
        in_specs=in_specs,
        out_specs=out_spec,
        compiler_params=pltpu.CompilerParams(
            dimension_semantics=("parallel",),     # shards grid over v7x's 2 TCs
            vmem_limit_bytes=vmem_limit),
        cost_estimate=cost,
    )(noise, *weight_bias_ops)

    return out[:B]


def init_generator_params(key, n_inputs=4, n_neurons=64, data_dim=32):
    """Deterministic synthetic init. Weights stored as (in, out); biases as (1, out)."""
    dims = [(n_inputs, n_neurons),
            (n_neurons, n_neurons),
            (n_neurons, n_neurons),
            (n_neurons, data_dim)]
    params = {}
    for i, (fan_in, fan_out) in enumerate(dims):
        key, wk, bk = jax.random.split(key, 3)
        bound = 1.0 / jnp.sqrt(fan_in)  # torch.nn.Linear default U(-1/sqrt(in), 1/sqrt(in))
        params[f"w{i}"] = jax.random.uniform(wk, (fan_in, fan_out), jnp.float32,
                                             minval=-bound, maxval=bound)
        params[f"b{i}"] = jax.random.uniform(bk, (1, fan_out), jnp.float32,
                                             minval=-bound, maxval=bound)
    return params


def _reference_forward(noise, params):
    h = noise
    for i in range(3):
        h = jnp.maximum(h @ params[f"w{i}"] + params[f"b{i}"], 0.0)
    return h @ params["w3"] + params["b3"]


if __name__ == "__main__":
    n_inputs, n_neurons, data_dim = 4, 64, 32

    key = jax.random.PRNGKey(0)
    key, nk_small, nk_big = jax.random.split(key, 3)
    params = init_generator_params(key, n_inputs, n_neurons, data_dim)

    # 1) Small batch, single grid step, f32 MXU path (matches reference tol).
    noise_small = jax.random.normal(nk_small, (8, n_inputs), dtype=jnp.float32)
    out_small = jax.block_until_ready(
        generator_forward(noise_small, params, compute_dtype=jnp.float32))
    ref_small = _reference_forward(noise_small, params)
    assert out_small.shape == (8, data_dim), out_small.shape
    assert jnp.allclose(out_small, ref_small, atol=1e-5, rtol=1e-5), \
        "f32 small-batch mismatch vs reference"

    # 2) Non-multiple batch exercising the batch grid + padding path
    #    (tb capped to ~B/4 -> 4 grid steps), f32 path.
    noise_big = jax.random.normal(nk_big, (200, n_inputs), dtype=jnp.float32)
    out_big = jax.block_until_ready(
        generator_forward(noise_big, params, block_batch=64,
                          compute_dtype=jnp.float32))
    ref_big = _reference_forward(noise_big, params)
    assert out_big.shape == (200, data_dim), out_big.shape
    assert jnp.allclose(out_big, ref_big, atol=1e-5, rtol=1e-5), \
        "f32 batched-grid mismatch vs reference"

    # 3) Default bf16 MXU fast path (v6e/v7x); f32 accumulation, loose tol.
    #    (Intentional: weights/activations of layers 1-3 are bf16 on the MXU.)
    out_bf16 = jax.block_until_ready(
        generator_forward(noise_big, params, block_batch=64))
    assert out_bf16.shape == (200, data_dim), out_bf16.shape
    assert jnp.allclose(out_bf16, ref_big, atol=1e-1, rtol=1e-1), \
        "bf16 path outside expected tolerance"

    print("KERNEL_OK")
</pallas_src>

<mosaic_0001>
module attributes {stable_mosaic.version = 11 : i64} {
  func.func @_generator_kernel(%arg0: i32, %arg1: memref<8x4xf32, #tpu.memory_space<vmem>>, %arg2: memref<4x64xf32, #tpu.memory_space<vmem>>, %arg3: memref<1x64xf32, #tpu.memory_space<vmem>>, %arg4: memref<64x64xf32, #tpu.memory_space<vmem>>, %arg5: memref<1x64xf32, #tpu.memory_space<vmem>>, %arg6: memref<64x64xf32, #tpu.memory_space<vmem>>, %arg7: memref<1x64xf32, #tpu.memory_space<vmem>>, %arg8: memref<64x32xf32, #tpu.memory_space<vmem>>, %arg9: memref<1x32xf32, #tpu.memory_space<vmem>>, %arg10: memref<8x32xf32, #tpu.memory_space<vmem>>) attributes {dimension_semantics = [#tpu.dimension_semantics<parallel>], iteration_bounds = array<i64: 1>, scalar_prefetch = 0 : i64, scratch_operands = 0 : i64, tpu.core_type = #tpu.core_type<tc>, window_params = [{transform_indices = @transform_0, window_bounds = array<i64: 8, 4>}, {pipeline_mode = #tpu.pipeline_mode<synchronous>, transform_indices = @transform_1, window_bounds = array<i64: 4, 64>}, {pipeline_mode = #tpu.pipeline_mode<synchronous>, transform_indices = @transform_2, window_bounds = array<i64: 1, 64>}, {pipeline_mode = #tpu.pipeline_mode<synchronous>, transform_indices = @transform_3, window_bounds = array<i64: 64, 64>}, {pipeline_mode = #tpu.pipeline_mode<synchronous>, transform_indices = @transform_4, window_bounds = array<i64: 1, 64>}, {pipeline_mode = #tpu.pipeline_mode<synchronous>, transform_indices = @transform_5, window_bounds = array<i64: 64, 64>}, {pipeline_mode = #tpu.pipeline_mode<synchronous>, transform_indices = @transform_6, window_bounds = array<i64: 1, 64>}, {pipeline_mode = #tpu.pipeline_mode<synchronous>, transform_indices = @transform_7, window_bounds = array<i64: 64, 32>}, {pipeline_mode = #tpu.pipeline_mode<synchronous>, transform_indices = @transform_8, window_bounds = array<i64: 1, 32>}, {transform_indices = @transform_9, window_bounds = array<i64: 8, 32>}]} {
    %c0 = arith.constant 0 : index
    %c0_0 = arith.constant 0 : index
    %0 = vector.load %arg1[%c0, %c0_0] : memref<8x4xf32, #tpu.memory_space<vmem>>, vector<8x4xf32>
    %c0_1 = arith.constant 0 : index
    %c0_2 = arith.constant 0 : index
    %1 = vector.load %arg2[%c0_1, %c0_2] : memref<4x64xf32, #tpu.memory_space<vmem>>, vector<4x64xf32>
    %2 = vector.extract_strided_slice %0 {offsets = [0, 0], sizes = [8, 1], strides = [1, 1]} : vector<8x4xf32> to vector<8x1xf32>
    %3 = vector.extract_strided_slice %1 {offsets = [0, 0], sizes = [1, 64], strides = [1, 1]} : vector<4x64xf32> to vector<1x64xf32>
    %4 = vector.broadcast %2 : vector<8x1xf32> to vector<8x64xf32>
    %5 = vector.broadcast %3 : vector<1x64xf32> to vector<8x64xf32>
    %6 = arith.mulf %4, %5 : vector<8x64xf32>
    %7 = vector.extract_strided_slice %0 {offsets = [0, 1], sizes = [8, 1], strides = [1, 1]} : vector<8x4xf32> to vector<8x1xf32>
    %8 = vector.extract_strided_slice %1 {offsets = [1, 0], sizes = [1, 64], strides = [1, 1]} : vector<4x64xf32> to vector<1x64xf32>
    %9 = vector.broadcast %7 : vector<8x1xf32> to vector<8x64xf32>
    %10 = vector.broadcast %8 : vector<1x64xf32> to vector<8x64xf32>
    %11 = arith.mulf %9, %10 : vector<8x64xf32>
    %12 = arith.addf %6, %11 : vector<8x64xf32>
    %13 = vector.extract_strided_slice %0 {offsets = [0, 2], sizes = [8, 1], strides = [1, 1]} : vector<8x4xf32> to vector<8x1xf32>
    %14 = vector.extract_strided_slice %1 {offsets = [2, 0], sizes = [1, 64], strides = [1, 1]} : vector<4x64xf32> to vector<1x64xf32>
    %15 = vector.broadcast %13 : vector<8x1xf32> to vector<8x64xf32>
    %16 = vector.broadcast %14 : vector<1x64xf32> to vector<8x64xf32>
    %17 = arith.mulf %15, %16 : vector<8x64xf32>
    %18 = arith.addf %12, %17 : vector<8x64xf32>
    %19 = vector.extract_strided_slice %0 {offsets = [0, 3], sizes = [8, 1], strides = [1, 1]} : vector<8x4xf32> to vector<8x1xf32>
    %20 = vector.extract_strided_slice %1 {offsets = [3, 0], sizes = [1, 64], strides = [1, 1]} : vector<4x64xf32> to vector<1x64xf32>
    %21 = vector.broadcast %19 : vector<8x1xf32> to vector<8x64xf32>
    %22 = vector.broadcast %20 : vector<1x64xf32> to vector<8x64xf32>
    %23 = arith.mulf %21, %22 : vector<8x64xf32>
    %24 = arith.addf %18, %23 : vector<8x64xf32>
    %c0_3 = arith.constant 0 : index
    %c0_4 = arith.constant 0 : index
    %25 = vector.load %arg3[%c0_3, %c0_4] : memref<1x64xf32, #tpu.memory_space<vmem>>, vector<1x64xf32>
    %26 = vector.broadcast %25 : vector<1x64xf32> to vector<8x64xf32>
    %27 = arith.addf %24, %26 : vector<8x64xf32>
    %cst = arith.constant 0.000000e+00 : f32
    %28 = vector.broadcast %cst : f32 to vector<8x64xf32>
    %29 = arith.maximumf %27, %28 : vector<8x64xf32>
    %c0_5 = arith.constant 0 : index
    %c0_6 = arith.constant 0 : index
    %30 = vector.load %arg4[%c0_5, %c0_6] : memref<64x64xf32, #tpu.memory_space<vmem>>, vector<64x64xf32>
    %cst_7 = arith.constant dense<0.000000e+00> : vector<8x64xf32>
    %31 = tpu.matmul %29, %30, %cst_7 {dimension_numbers = #tpu.dot_dimension_numbers<[1], [0], [0], [1], [0, 0, 1, 1], [], []>} : vector<8x64xf32>, vector<64x64xf32>, vector<8x64xf32> -> vector<8x64xf32>
    %c0_8 = arith.constant 0 : index
    %c0_9 = arith.constant 0 : index
    %32 = vector.load %arg5[%c0_8, %c0_9] : memref<1x64xf32, #tpu.memory_space<vmem>>, vector<1x64xf32>
    %33 = vector.broadcast %32 : vector<1x64xf32> to vector<8x64xf32>
    %34 = arith.addf %31, %33 : vector<8x64xf32>
    %cst_10 = arith.constant 0.000000e+00 : f32
    %35 = vector.broadcast %cst_10 : f32 to vector<8x64xf32>
    %36 = arith.maximumf %34, %35 : vector<8x64xf32>
    %c0_11 = arith.constant 0 : index
    %c0_12 = arith.constant 0 : index
    %37 = vector.load %arg6[%c0_11, %c0_12] : memref<64x64xf32, #tpu.memory_space<vmem>>, vector<64x64xf32>
    %cst_13 = arith.constant dense<0.000000e+00> : vector<8x64xf32>
    %38 = tpu.matmul %36, %37, %cst_13 {dimension_numbers = #tpu.dot_dimension_numbers<[1], [0], [0], [1], [0, 0, 1, 1], [], []>} : vector<8x64xf32>, vector<64x64xf32>, vector<8x64xf32> -> vector<8x64xf32>
    %c0_14 = arith.constant 0 : index
    %c0_15 = arith.constant 0 : index
    %39 = vector.load %arg7[%c0_14, %c0_15] : memref<1x64xf32, #tpu.memory_space<vmem>>, vector<1x64xf32>
    %40 = vector.broadcast %39 : vector<1x64xf32> to vector<8x64xf32>
    %41 = arith.addf %38, %40 : vector<8x64xf32>
    %cst_16 = arith.constant 0.000000e+00 : f32
    %42 = vector.broadcast %cst_16 : f32 to vector<8x64xf32>
    %43 = arith.maximumf %41, %42 : vector<8x64xf32>
    %c0_17 = arith.constant 0 : index
    %c0_18 = arith.constant 0 : index
    %44 = vector.load %arg8[%c0_17, %c0_18] : memref<64x32xf32, #tpu.memory_space<vmem>>, vector<64x32xf32>
    %cst_19 = arith.constant dense<0.000000e+00> : vector<8x32xf32>
    %45 = tpu.matmul %43, %44, %cst_19 {dimension_numbers = #tpu.dot_dimension_numbers<[1], [0], [0], [1], [0, 0, 1, 1], [], []>} : vector<8x64xf32>, vector<64x32xf32>, vector<8x32xf32> -> vector<8x32xf32>
    %c0_20 = arith.constant 0 : index
    %c0_21 = arith.constant 0 : index
    %46 = vector.load %arg9[%c0_20, %c0_21] : memref<1x32xf32, #tpu.memory_space<vmem>>, vector<1x32xf32>
    %47 = vector.broadcast %46 : vector<1x32xf32> to vector<8x32xf32>
    %48 = arith.addf %45, %47 : vector<8x32xf32>
    %c0_22 = arith.constant 0 : index
    %c0_23 = arith.constant 0 : index
    %49 = vector.load %arg10[%c0_22, %c0_23] : memref<8x32xf32, #tpu.memory_space<vmem>>, vector<8x32xf32>
    tpu.vector_store %arg10[%c0_22, %c0_23], %48 {strides = array<i32>} : memref<8x32xf32, #tpu.memory_space<vmem>>, vector<8x32xf32>,
    return
  }
  func.func @transform_0(%arg0: i32) -> (i32, i32) {
    %c0_i32 = arith.constant 0 : i32
    %c0_i32_0 = arith.constant 0 : i32
    return %arg0, %c0_i32 : i32, i32
  }
  func.func @transform_1(%arg0: i32) -> (i32, i32) {
    %c0_i32 = arith.constant 0 : i32
    %c0_i32_0 = arith.constant 0 : i32
    %c0_i32_1 = arith.constant 0 : i32
    return %c0_i32, %c0_i32_0 : i32, i32
  }
  func.func @transform_2(%arg0: i32) -> (i32, i32) {
    %c0_i32 = arith.constant 0 : i32
    %c0_i32_0 = arith.constant 0 : i32
    %c0_i32_1 = arith.constant 0 : i32
    return %c0_i32, %c0_i32_0 : i32, i32
  }
  func.func @transform_3(%arg0: i32) -> (i32, i32) {
    %c0_i32 = arith.constant 0 : i32
    %c0_i32_0 = arith.constant 0 : i32
    %c0_i32_1 = arith.constant 0 : i32
    return %c0_i32, %c0_i32_0 : i32, i32
  }
  func.func @transform_4(%arg0: i32) -> (i32, i32) {
    %c0_i32 = arith.constant 0 : i32
    %c0_i32_0 = arith.constant 0 : i32
    %c0_i32_1 = arith.constant 0 : i32
    return %c0_i32, %c0_i32_0 : i32, i32
  }
  func.func @transform_5(%arg0: i32) -> (i32, i32) {
    %c0_i32 = arith.constant 0 : i32
    %c0_i32_0 = arith.constant 0 : i32
    %c0_i32_1 = arith.constant 0 : i32
    return %c0_i32, %c0_i32_0 : i32, i32
  }
  func.func @transform_6(%arg0: i32) -> (i32, i32) {
    %c0_i32 = arith.constant 0 : i32
    %c0_i32_0 = arith.constant 0 : i32
    %c0_i32_1 = arith.constant 0 : i32
    return %c0_i32, %c0_i32_0 : i32, i32
  }
  func.func @transform_7(%arg0: i32) -> (i32, i32) {
    %c0_i32 = arith.constant 0 : i32
    %c0_i32_0 = arith.constant 0 : i32
    %c0_i32_1 = arith.constant 0 : i32
    return %c0_i32, %c0_i32_0 : i32, i32
  }
  func.func @transform_8(%arg0: i32) -> (i32, i32) {
    %c0_i32 = arith.constant 0 : i32
    %c0_i32_0 = arith.constant 0 : i32
    %c0_i32_1 = arith.constant 0 : i32
    return %c0_i32, %c0_i32_0 : i32, i32
  }
  func.func @transform_9(%arg0: i32) -> (i32, i32) {
    %c0_i32 = arith.constant 0 : i32
    %c0_i32_0 = arith.constant 0 : i32
    return %arg0, %c0_i32 : i32, i32
  }
}

</mosaic_0001>

<llo_original>
// kernel: tpu_custom_call.1
$region0: #{tpu_custom_call.1}
  #allocation0 [shape = 'u32[]', space=smem, size = 0x4, offset = 0x4, fixed_abs, tag = 'smem constant byte address 0x4 - core index']
  #allocation1 [shape = 'u32[144,128]{1,0:T(1,128)}', space=vmem, size = 0x12000, scoped, tag = 'internal scratch']
  %s0 = inlined_call_operand.vmem [shape: f32[8,4], index: 0, kind: input, shape index: {}]
  %s1 = inlined_call_operand.vmem [shape: f32[4,64], index: 1, kind: input, shape index: {}]
  %s2 = inlined_call_operand.vmem [shape: f32[1,64], index: 2, kind: input, shape index: {}]
  %s3 = inlined_call_operand.vmem [shape: f32[64,64], index: 3, kind: input, shape index: {}]
  %s4 = inlined_call_operand.vmem [shape: f32[1,64], index: 4, kind: input, shape index: {}]
  %s5 = inlined_call_operand.hbm [shape: f32[64,64], index: 5, kind: input, shape index: {}]
  %s6 = inlined_call_operand.vmem [shape: f32[1,64], index: 6, kind: input, shape index: {}]
  %s7 = inlined_call_operand.vmem [shape: f32[64,32], index: 7, kind: input, shape index: {}]
  %s8 = inlined_call_operand.vmem [shape: f32[1,32], index: 8, kind: input, shape index: {}]
  %s9 = inlined_call_operand.hbm [shape: f32[8,32], index: 9, kind: output, shape index: {}]
  %s10 = sld [smem:[#allocation0]]
  $region50: #{tpu_custom_call.1} parent=0
    _
  %s12 = ssub.s32 1, %s10
  %s13 = scalar_select 0, %s12, %s10
  $region1: #{tpu_custom_call.1} parent=0
    #allocation2 [shape = 'u8[32768]{0}', space=vmem, size = 0x8000, scoped, tag = 'input window, operand 5, single buffered']
    #allocation3 [shape = 's32[1]{0}', space=sflag, size = 0x4, scoped, tag = 'scoped memory for tpu_custom_call.1']
    #allocation4 [shape = 's32[1]{0}', space=sflag, size = 0x4, scoped, tag = 'scoped memory for tpu_custom_call.1']
    #allocation5 [shape = 'u8[4096]{0}', space=vmem, size = 0x1000, scoped, tag = 'output window, operand 0, single buffered']
    %14 = vsyncpa [#allocation3], 0
    %15 = vsyncpa [#allocation4], 0
    // Predicated region
    $region2: #{tpu_custom_call.1} parent=1 // pred_check
      _
    $region3: #{tpu_custom_call.1} parent=1 // pred_check_branch
      %17 = sbr.rel (0) target = $region5
    $region4: #{tpu_custom_call.1} parent=1 // pred_region
      _
    $region5: #{tpu_custom_call.1} parent=1 // pred_fallthru
      _
    // Predicated region
    $region6: #{tpu_custom_call.1} parent=1 // pred_check
      _
    $region7: #{tpu_custom_call.1} parent=1 // pred_check_branch
      %19 = sbr.rel (0) target = $region9
    $region8: #{tpu_custom_call.1} parent=1 // pred_region
      _
    $region9: #{tpu_custom_call.1} parent=1 // pred_fallthru
      _
    // Predicated region
    $region10: #{tpu_custom_call.1} parent=1 // pred_check
      _
    $region11: #{tpu_custom_call.1} parent=1 // pred_check_branch
      %21 = sbr.rel (0) target = $region13
    $region12: #{tpu_custom_call.1} parent=1 // pred_region
      _
    $region13: #{tpu_custom_call.1} parent=1 // pred_fallthru
      _
    // Predicated region
    $region14: #{tpu_custom_call.1} parent=1 // pred_check
      _
    $region15: #{tpu_custom_call.1} parent=1 // pred_check_branch
      %23 = sbr.rel (0) target = $region17
    $region16: #{tpu_custom_call.1} parent=1 // pred_region
      _
    $region17: #{tpu_custom_call.1} parent=1 // pred_fallthru
      _
    // Predicated region
    $region18: #{tpu_custom_call.1} parent=1 // pred_check
      _
    $region19: #{tpu_custom_call.1} parent=1 // pred_check_branch
      %25 = sbr.rel (0) target = $region21
    $region20: #{tpu_custom_call.1} parent=1 // pred_region
      _
    $region21: #{tpu_custom_call.1} parent=1 // pred_fallthru
      _
    // Predicated region
    $region22: #{tpu_custom_call.1} parent=1 // pred_check
      _
    $region23: #{tpu_custom_call.1} parent=1 // pred_check_branch
      %27 = sbr.rel (0) target = $region25
    $region24: #{tpu_custom_call.1} parent=1 // pred_region
      %s29 = ssub.s32 1024, 1024
      %30 = vsyncadd [#allocation3], %s29
      %s31 = sshll.u32 [#allocation2], 4
      %s32 = int_to_ptr.vmem [resolvable:$true] %s31
      %37 = dma.hbm_to_vmem [thread:$0]  %s5, 1024, %s32, [#allocation3], 128, 128, 8
    $region25: #{tpu_custom_call.1} parent=1 // pred_fallthru
      _
    // Predicated region
    $region26: #{tpu_custom_call.1} parent=1 // pred_check
      _
    $region27: #{tpu_custom_call.1} parent=1 // pred_check_branch
      %39 = sbr.rel (0) target = $region29
    $region28: #{tpu_custom_call.1} parent=1 // pred_region
      _
    $region29: #{tpu_custom_call.1} parent=1 // pred_fallthru
      _
    // Predicated region
    $region30: #{tpu_custom_call.1} parent=1 // pred_check
      _
    $region31: #{tpu_custom_call.1} parent=1 // pred_check_branch
      %41 = sbr.rel (0) target = $region33
    $region32: #{tpu_custom_call.1} parent=1 // pred_region
      _
    $region33: #{tpu_custom_call.1} parent=1 // pred_fallthru
      _
    // Predicated region
    $region34: #{tpu_custom_call.1} parent=1 // pred_check
      _
    $region35: #{tpu_custom_call.1} parent=1 // pred_check_branch
      %43 = sbr.rel (0) target = $region37
    $region36: #{tpu_custom_call.1} parent=1 // pred_region
      _
    $region37: #{tpu_custom_call.1} parent=1 // pred_fallthru
      _
    // Predicated region
    $region38: #{tpu_custom_call.1} parent=1 // pred_check
      _
    $region39: #{tpu_custom_call.1} parent=1 // pred_check_branch
      %45 = sbr.rel (0) target = $region41
    $region40: #{tpu_custom_call.1} parent=1 // pred_region
      %46 = dma.done [#allocation3], 1024
    $region41: #{tpu_custom_call.1} parent=1 // pred_fallthru
      _
    %v47 = vld [vmem:[%s0] sm:$0xff]
    %v48 = vld [vmem:[%s1] sm:$0xf]
    %50 = vset.pattern.permute.xlu0 0
    %51 = vperm.xlu0 %50, %v47
    %v52 = vpop.permute.xlu0 %51
    %v54 = vlaneseq
    %v55 = vshrl.u32 %v54, 7
    %v56 = vsub.s32 0, %v55
    %v57 = vrot.slane %v48, %v56
    %v58 = vmul.f32 %v52, %v57
    %59 = vset.pattern.permute.xlu0 1
    %60 = vperm.xlu0 %59, %v47
    %v61 = vpop.permute.xlu0 %60
    %v63 = vlaneseq
    %v64 = vshrl.u32 %v63, 7
    %v65 = vsub.s32 1, %v64
    %v66 = vrot.slane %v48, %v65
    %v67 = vmul.f32 %v61, %v66
    %v68 = vadd.f32 %v58, %v67
    %69 = vset.pattern.permute.xlu0 2
    %70 = vperm.xlu0 %69, %v47
    %v71 = vpop.permute.xlu0 %70
    %v73 = vlaneseq
    %v74 = vshrl.u32 %v73, 7
    %v75 = vsub.s32 2, %v74
    %v76 = vrot.slane %v48, %v75
    %v77 = vmul.f32 %v71, %v76
    %v78 = vadd.f32 %v68, %v77
    %79 = vset.pattern.permute.xlu0 3
    %80 = vperm.xlu0 %79, %v47
    %v81 = vpop.permute.xlu0 %80
    %v83 = vlaneseq
    %v84 = vshrl.u32 %v83, 7
    %v85 = vsub.s32 3, %v84
    %v86 = vrot.slane %v48, %v85
    %v87 = vmul.f32 %v81, %v86
    %v88 = vadd.f32 %v78, %v87
    %v89 = vld [vmem:[%s2] sm:$0x1]
    %v91 = vlaneseq
    %v92 = vshrl.u32 %v91, 7
    %v93 = vsub.s32 0, %v92
    %v94 = vrot.slane %v89, %v93
    %v96 = vadd.f32 %v88, %v94
    %v97 = vmax.f32 %v96, 0.0
    %v98 = vld [vmem:[%s3] sm:$0xff]
    %v99 = vld [vmem:[%s3 + $0x8] sm:$0xff]
    %v100 = vld [vmem:[%s3 + $0x10] sm:$0xff]
    %v101 = vld [vmem:[%s3 + $0x18] sm:$0xff]
    %v102 = vld [vmem:[%s3 + $0x20] sm:$0xff]
    %v103 = vld [vmem:[%s3 + $0x28] sm:$0xff]
    %v104 = vld [vmem:[%s3 + $0x30] sm:$0xff]
    %v105 = vld [vmem:[%s3 + $0x38] sm:$0xff]
    %v106 = vld [vmem:[%s4] sm:$0x1]
    %v108 = vlaneseq
    %v109 = vshrl.u32 %v108, 7
    %v110 = vsub.s32 0, %v109
    %v111 = vrot.slane %v106, %v110
    %vm113 = vcmask 523264
    %v115 = vsel %vm113, %v97, 0
    %117 = vmatprep.subr.mxu0 0.0
    %118 = vmatpush1.msra.mxu0 %v98
    %119 = vmatprep.subr.mxu0 0.0
    %120 = vmatpush1.msra.mxu0 %v99
    %121 = vmatprep.subr.mxu0 0.0
    %122 = vmatpush1.msra.mxu0 %v100
    %123 = vmatprep.subr.mxu0 0.0
    %124 = vmatpush1.msra.mxu0 %v101
    %125 = vmatprep.subr.mxu0 0.0
    %126 = vmatpush1.msra.mxu0 %v102
    %127 = vmatprep.subr.mxu0 0.0
    %128 = vmatpush1.msra.mxu0 %v103
    %129 = vmatprep.subr.mxu0 0.0
    %130 = vmatpush1.msra.mxu0 %v104
    %131 = vmatprep.subr.mxu0 0.0
    %132 = vmatpush1.msra.mxu0 %v105
    %133 = vmatprep.subr.mxu0 0.0
    %134 = vmatpush1.msra.mxu0 0.0
    %135 = vmatprep.subr.mxu0 0.0
    %136 = vmatpush1.msra.mxu0 0.0
    %137 = vmatprep.subr.mxu0 0.0
    %138 = vmatpush1.msra.mxu0 0.0
    %139 = vmatprep.subr.mxu0 0.0
    %140 = vmatpush1.msra.mxu0 0.0
    %141 = vmatprep.subr.mxu0 0.0
    %142 = vmatpush1.msra.mxu0 0.0
    %143 = vmatprep.subr.mxu0 0.0
    %144 = vmatpush1.msra.mxu0 0.0
    %145 = vmatprep.subr.mxu0 0.0
    %146 = vmatpush1.msra.mxu0 0.0
    %147 = vmatprep.subr.mxu0 0.0
    %148 = vmatpush1.msra.mxu0 0.0
    %149 = vmatprep.subr.mxu0 0.0
    %150 = vmatpush1.msra.mxu0 0.0
    %151 = vmatprep.subr.mxu0 0.0
    %152 = vmatpush1.msra.mxu0 0.0
    %153 = vmatprep.subr.mxu0 0.0
    %154 = vmatpush1.msra.mxu0 0.0
    %155 = vmatprep.subr.mxu0 0.0
    %156 = vmatpush1.msra.mxu0 0.0
    %157 = vmatprep.subr.mxu0 0.0
    %158 = vmatpush1.msra.mxu0 0.0
    %159 = vmatprep.subr.mxu0 0.0
    %160 = vmatpush1.msra.mxu0 0.0
    %161 = vmatprep.subr.mxu0 0.0
    %162 = vmatpush1.msra.mxu0 0.0
    %163 = vmatprep.subr.mxu0 0.0
    %164 = vmatpush1.msra.mxu0 0.0
    %165 = vmatprep.subr.mxu0 0.0
    %166 = vmatpush1.msra.mxu0 0.0
    %167 = vmatprep.subr.mxu0 0.0
    %168 = vmatpush1.msra.mxu0 0.0
    %169 = vmatprep.subr.mxu0 0.0
    %170 = vmatpush1.msra.mxu0 0.0
    %171 = vmatprep.subr.mxu0 0.0
    %172 = vmatpush1.msra.mxu0 0.0
    %173 = vmatprep.subr.mxu0 0.0
    %174 = vmatpush1.msra.mxu0 0.0
    %175 = vmatprep.subr.mxu0 0.0
    %176 = vmatpush1.msra.mxu0 0.0
    %177 = vmatprep.subr.mxu0 0.0
    %178 = vmatpush1.msra.mxu0 0.0
    %179 = vmatprep.subr.mxu0 0.0
    %180 = vmatpush1.msra.mxu0 0.0
    %181 = vmatprep.mubr.f32.mxu0 0.0
    %182 = vmatmul.mubr.f32.gmra.mrb[0].mxu0 %v115
    %v183 = vpop.f32.mrb[0].mxu0
    %v184 = vadd.f32 %v111, %v183
    %v185 = vpop.f32.mrb[0].mxu0
    %186 = vdwg.mxu0
    %v187 = vmax.f32 %v184, 0.0
    %v188 = vld [vmem:[#allocation2] sm:$0xff]
    %v189 = vld [vmem:[#allocation2 + $0x8] sm:$0xff]
    %v190 = vld [vmem:[#allocation2 + $0x10] sm:$0xff]
    %v191 = vld [vmem:[#allocation2 + $0x18] sm:$0xff]
    %v192 = vld [vmem:[#allocation2 + $0x20] sm:$0xff]
    %v193 = vld [vmem:[#allocation2 + $0x28] sm:$0xff]
    %v194 = vld [vmem:[#allocation2 + $0x30] sm:$0xff]
    %v195 = vld [vmem:[#allocation2 + $0x38] sm:$0xff]
    %v196 = vld [vmem:[%s6] sm:$0x1]
    %v198 = vlaneseq
    %v199 = vshrl.u32 %v198, 7
    %v200 = vsub.s32 0, %v199
    %v201 = vrot.slane %v196, %v200
    %v204 = vsel %vm113, %v187, 0
    %206 = vmatprep.subr.mxu0 0.0
    %207 = vmatpush1.msra.mxu0 %v188
    %208 = vmatprep.subr.mxu0 0.0
    %209 = vmatpush1.msra.mxu0 %v189
    %210 = vmatprep.subr.mxu0 0.0
    %211 = vmatpush1.msra.mxu0 %v190
    %212 = vmatprep.subr.mxu0 0.0
    %213 = vmatpush1.msra.mxu0 %v191
    %214 = vmatprep.subr.mxu0 0.0
    %215 = vmatpush1.msra.mxu0 %v192
    %216 = vmatprep.subr.mxu0 0.0
    %217 = vmatpush1.msra.mxu0 %v193
    %218 = vmatprep.subr.mxu0 0.0
    %219 = vmatpush1.msra.mxu0 %v194
    %220 = vmatprep.subr.mxu0 0.0
    %221 = vmatpush1.msra.mxu0 %v195
    %222 = vmatprep.subr.mxu0 0.0
    %223 = vmatpush1.msra.mxu0 0.0
    %224 = vmatprep.subr.mxu0 0.0
    %225 = vmatpush1.msra.mxu0 0.0
    %226 = vmatprep.subr.mxu0 0.0
    %227 = vmatpush1.msra.mxu0 0.0
    %228 = vmatprep.subr.mxu0 0.0
    %229 = vmatpush1.msra.mxu0 0.0
    %230 = vmatprep.subr.mxu0 0.0
    %231 = vmatpush1.msra.mxu0 0.0
    %232 = vmatprep.subr.mxu0 0.0
    %233 = vmatpush1.msra.mxu0 0.0
    %234 = vmatprep.subr.mxu0 0.0
    %235 = vmatpush1.msra.mxu0 0.0
    %236 = vmatprep.subr.mxu0 0.0
    %237 = vmatpush1.msra.mxu0 0.0
    %238 = vmatprep.subr.mxu0 0.0
    %239 = vmatpush1.msra.mxu0 0.0
    %240 = vmatprep.subr.mxu0 0.0
    %241 = vmatpush1.msra.mxu0 0.0
    %242 = vmatprep.subr.mxu0 0.0
    %243 = vmatpush1.msra.mxu0 0.0
    %244 = vmatprep.subr.mxu0 0.0
    %245 = vmatpush1.msra.mxu0 0.0
    %246 = vmatprep.subr.mxu0 0.0
    %247 = vmatpush1.msra.mxu0 0.0
    %248 = vmatprep.subr.mxu0 0.0
    %249 = vmatpush1.msra.mxu0 0.0
    %250 = vmatprep.subr.mxu0 0.0
    %251 = vmatpush1.msra.mxu0 0.0
    %252 = vmatprep.subr.mxu0 0.0
    %253 = vmatpush1.msra.mxu0 0.0
    %254 = vmatprep.subr.mxu0 0.0
    %255 = vmatpush1.msra.mxu0 0.0
    %256 = vmatprep.subr.mxu0 0.0
    %257 = vmatpush1.msra.mxu0 0.0
    %258 = vmatprep.subr.mxu0 0.0
    %259 = vmatpush1.msra.mxu0 0.0
    %260 = vmatprep.subr.mxu0 0.0
    %261 = vmatpush1.msra.mxu0 0.0
    %262 = vmatprep.subr.mxu0 0.0
    %263 = vmatpush1.msra.mxu0 0.0
    %264 = vmatprep.subr.mxu0 0.0
    %265 = vmatpush1.msra.mxu0 0.0
    %266 = vmatprep.subr.mxu0 0.0
    %267 = vmatpush1.msra.mxu0 0.0
    %268 = vmatprep.subr.mxu0 0.0
    %269 = vmatpush1.msra.mxu0 0.0
    %270 = vmatprep.mubr.f32.mxu0 0.0
    %271 = vmatmul.mubr.f32.gmra.mrb[0].mxu0 %v204
    %v272 = vpop.f32.mrb[0].mxu0
    %v273 = vadd.f32 %v201, %v272
    %v274 = vpop.f32.mrb[0].mxu0
    %275 = vdwg.mxu0
    %v276 = vmax.f32 %v273, 0.0
    %v277 = vld [vmem:[%s7] sm:$0xff]
    %v278 = vld [vmem:[%s7 + $0x8] sm:$0xff]
    %v279 = vld [vmem:[%s7 + $0x10] sm:$0xff]
    %v280 = vld [vmem:[%s7 + $0x18] sm:$0xff]
    %v281 = vld [vmem:[%s7 + $0x20] sm:$0xff]
    %v282 = vld [vmem:[%s7 + $0x28] sm:$0xff]
    %v283 = vld [vmem:[%s7 + $0x30] sm:$0xff]
    %v284 = vld [vmem:[%s7 + $0x38] sm:$0xff]
    %v285 = vld [vmem:[%s8] sm:$0x1]
    %v287 = vlaneseq
    %v288 = vshrl.u32 %v287, 7
    %v289 = vsub.s32 0, %v288
    %v290 = vrot.slane %v285, %v289
    %v293 = vsel %vm113, %v276, 0
    %295 = vmatprep.subr.mxu0 0.0
    %296 = vmatpush1.msra.mxu0 %v277
    %297 = vmatprep.subr.mxu0 0.0
    %298 = vmatpush1.msra.mxu0 %v278
    %299 = vmatprep.subr.mxu0 0.0
    %300 = vmatpush1.msra.mxu0 %v279
    %301 = vmatprep.subr.mxu0 0.0
    %302 = vmatpush1.msra.mxu0 %v280
    %303 = vmatprep.subr.mxu0 0.0
    %304 = vmatpush1.msra.mxu0 %v281
    %305 = vmatprep.subr.mxu0 0.0
    %306 = vmatpush1.msra.mxu0 %v282
    %307 = vmatprep.subr.mxu0 0.0
    %308 = vmatpush1.msra.mxu0 %v283
    %309 = vmatprep.subr.mxu0 0.0
    %310 = vmatpush1.msra.mxu0 %v284
    %311 = vmatprep.subr.mxu0 0.0
    %312 = vmatpush1.msra.mxu0 0.0
    %313 = vmatprep.subr.mxu0 0.0
    %314 = vmatpush1.msra.mxu0 0.0
    %315 = vmatprep.subr.mxu0 0.0
    %316 = vmatpush1.msra.mxu0 0.0
    %317 = vmatprep.subr.mxu0 0.0
    %318 = vmatpush1.msra.mxu0 0.0
    %319 = vmatprep.subr.mxu0 0.0
    %320 = vmatpush1.msra.mxu0 0.0
    %321 = vmatprep.subr.mxu0 0.0
    %322 = vmatpush1.msra.mxu0 0.0
    %323 = vmatprep.subr.mxu0 0.0
    %324 = vmatpush1.msra.mxu0 0.0
    %325 = vmatprep.subr.mxu0 0.0
    %326 = vmatpush1.msra.mxu0 0.0
    %327 = vmatprep.subr.mxu0 0.0
    %328 = vmatpush1.msra.mxu0 0.0
    %329 = vmatprep.subr.mxu0 0.0
    %330 = vmatpush1.msra.mxu0 0.0
    %331 = vmatprep.subr.mxu0 0.0
    %332 = vmatpush1.msra.mxu0 0.0
    %333 = vmatprep.subr.mxu0 0.0
    %334 = vmatpush1.msra.mxu0 0.0
    %335 = vmatprep.subr.mxu0 0.0
    %336 = vmatpush1.msra.mxu0 0.0
    %337 = vmatprep.subr.mxu0 0.0
    %338 = vmatpush1.msra.mxu0 0.0
    %339 = vmatprep.subr.mxu0 0.0
    %340 = vmatpush1.msra.mxu0 0.0
    %341 = vmatprep.subr.mxu0 0.0
    %342 = vmatpush1.msra.mxu0 0.0
    %343 = vmatprep.subr.mxu0 0.0
    %344 = vmatpush1.msra.mxu0 0.0
    %345 = vmatprep.subr.mxu0 0.0
    %346 = vmatpush1.msra.mxu0 0.0
    %347 = vmatprep.subr.mxu0 0.0
    %348 = vmatpush1.msra.mxu0 0.0
    %349 = vmatprep.subr.mxu0 0.0
    %350 = vmatpush1.msra.mxu0 0.0
    %351 = vmatprep.subr.mxu0 0.0
    %352 = vmatpush1.msra.mxu0 0.0
    %353 = vmatprep.subr.mxu0 0.0
    %354 = vmatpush1.msra.mxu0 0.0
    %355 = vmatprep.subr.mxu0 0.0
    %356 = vmatpush1.msra.mxu0 0.0
    %357 = vmatprep.subr.mxu0 0.0
    %358 = vmatpush1.msra.mxu0 0.0
    %359 = vmatprep.mubr.f32.mxu0 0.0
    %360 = vmatmul.mubr.f32.gmra.mrb[0].mxu0 %v293
    %v361 = vpop.f32.mrb[0].mxu0
    %v362 = vadd.f32 %v290, %v361
    %v363 = vpop.f32.mrb[0].mxu0
    %364 = vdwg.mxu0
    %vm365 = vcmask 261120
    %366 = vst.msk [vmem:[#allocation5] sm:$0xff] %vm365, %v362
    // Predicated region
    $region42: #{tpu_custom_call.1} parent=1 // pred_check
      _
    $region43: #{tpu_custom_call.1} parent=1 // pred_check_branch
      %368 = sbr.rel (0) target = $region45
    $region44: #{tpu_custom_call.1} parent=1 // pred_region
      %s370 = ssub.s32 128, 128
      %371 = vsyncadd [#allocation4], %s370
      %s373 = sshll.u32 [#allocation5], 4
      %s374 = int_to_ptr.vmem [resolvable:$true] %s373
      %376 = dma.vmem_to_hbm [thread:$0]  %s374, 128, %s9, [#allocation4]
    $region45: #{tpu_custom_call.1} parent=1 // pred_fallthru
      _
    // Predicated region
    $region46: #{tpu_custom_call.1} parent=1 // pred_check
      _
    $region47: #{tpu_custom_call.1} parent=1 // pred_check_branch
      %378 = sbr.rel (0) target = $region49
    $region48: #{tpu_custom_call.1} parent=1 // pred_region
      %379 = dma.done [#allocation4], 128
    $region49: #{tpu_custom_call.1} parent=1 // pred_fallthru
      _
    %380 = vsyncpa [#allocation3], 1
    %381 = vsyncpa [#allocation4], 1

</llo_original>
